<compile_context>
chip_gen: v7x
topology: tpu7x:2x2x1
jax: 0.10.0
libtpu: 0.0.40
codegen_flags: <defaults>
</compile_context>

<pallas_src>
import jax
import jax.numpy as jnp
from jax import lax
from jax.experimental import pallas as pl
from jax.experimental.pallas import tpu as pltpu


# ----------------------------------------------------------------------------
# Kernel
# ----------------------------------------------------------------------------
def _residual_kernel(x_ref, sh_ref, a1_ref, b1_ref, w1_ref,
                     a2_ref, b2_ref, w2_ref, w3_ref, bo_ref, o_ref):
    # x_ref : (N*H, W*Cin)        lane-dense batch slab
    # sh_ref: (2, N*H, N*H)       block-diag row-shift matrices (k=-1, k=+1)
    # w1_ref: (W*Cin,  3*W*Cout)  wide banded conv1 weights (3 vertical taps)
    # w2_ref: (W*Cout, 3*W*Cout)  wide banded conv2 weights
    # w3_ref: (W*Cin,  W*Cout)    block-diagonal 1x1-conv weights
    # o_ref : (N*H, W*Cout)       lane-dense output slab
    x = x_ref[...]                                         # (NH, WCi)
    sh_dn = sh_ref[0]                                      # row h <- t[h-1]
    sh_up = sh_ref[1]                                      # row h <- t[h+1]
    wco = o_ref.shape[-1]

    def conv3x3(t, w_wide_ref):
        # One wide MXU matmul for all three vertical taps, then two small
        # shift matmuls (exact: shift matrices are 0/1 row selectors).
        u = jnp.dot(t, w_wide_ref[...], preferred_element_type=jnp.float32)
        u0 = u[:, :wco]                # tap kh=0 -> needs input row h-1
        u1 = u[:, wco:2 * wco]         # tap kh=1 -> input row h
        u2 = u[:, 2 * wco:]            # tap kh=2 -> input row h+1
        return (jnp.dot(sh_dn, u0, preferred_element_type=jnp.float32)
                + u1
                + jnp.dot(sh_up, u2, preferred_element_type=jnp.float32))

    # BN1 (folded inference affine) + ReLU, lane-dense
    t1 = jnp.maximum(x * a1_ref[...] + b1_ref[...], 0.0)
    # conv1 (its bias is folded into BN2's bias on the host)
    y1 = conv3x3(t1, w1_ref)
    # BN2 + ReLU
    t2 = jnp.maximum(y1 * a2_ref[...] + b2_ref[...], 0.0)
    # conv2 and 1x1 projection shortcut; conv2+conv3 biases pre-summed in bo
    y2 = conv3x3(t2, w2_ref)
    sc = jnp.dot(x, w3_ref[...], preferred_element_type=jnp.float32)

    # Full 128-lane, unmasked store of the whole batch slab.
    o_ref[...] = (y2 + sc + bo_ref[...]).astype(o_ref.dtype)


# ----------------------------------------------------------------------------
# Host-side parameter preparation
# ----------------------------------------------------------------------------
def _banded_wide_taps(w_hwio, W):
    """(3,3,Ci,Co) HWIO weights -> (W*Ci, 3*W*Co) wide banded matrix.

    For vertical tap kh, block kh of the output satisfies
      taps[kh][wi*Ci+ci, wo*Co+co] = w[kh, wi-wo+1, ci, co] for |wi-wo| <= 1,
    zero elsewhere (this encodes the horizontal taps and the width-1 zero pad).
    The three taps are concatenated along the lane (N) dimension so the kernel
    issues a single wide MXU matmul per conv.
    """
    KH, KW, Ci, Co = w_hwio.shape
    taps = []
    for kh in range(KH):
        m = jnp.zeros((W * Ci, W * Co), jnp.float32)
        for kw in range(KW):
            band = jnp.eye(W, k=1 - kw, dtype=jnp.float32)  # band[wi,wo]=1 iff wi==wo+kw-1
            m = m + jnp.kron(band, w_hwio[kh, kw].astype(jnp.float32))
        taps.append(m)
    return jnp.concatenate(taps, axis=-1)                   # (W*Ci, 3*W*Co)


def prepare_params(raw_params, N, H, W, eps=1e-3):
    """Fold BN + biases; build lane-dense / wide-banded weights and batch-folded
    block-diagonal shift matrices for the kernel."""
    (g1, be1, m1, v1, w1, cb1, g2, be2, m2, v2, w2, cb2, w3, cb3) = raw_params

    inv1 = g1 / jnp.sqrt(v1 + eps)
    a1 = inv1
    b1 = be1 - m1 * inv1
    inv2 = g2 / jnp.sqrt(v2 + eps)
    a2 = inv2
    b2 = (be2 - m2 * inv2) + inv2 * cb1          # conv1 bias folded into BN2 bias
    bo = cb2 + cb3                               # conv2 + conv3 biases, added once

    def tile(v):                                 # per-channel -> (1, W*C) lane-dense
        return jnp.tile(v.astype(jnp.float32), (W,)).reshape(1, -1)

    w1w = _banded_wide_taps(w1, W)                                   # (W*Cin,  3*W*Cout)
    w2w = _banded_wide_taps(w2, W)                                   # (W*Cout, 3*W*Cout)
    w3b = jnp.kron(jnp.eye(W, dtype=jnp.float32),
                   w3.astype(jnp.float32))                           # (W*Cin, W*Cout)

    # Batch-folded block-diagonal row-shift matrices: no cross-image leakage.
    eye_n = jnp.eye(N, dtype=jnp.float32)
    shifts = jnp.stack([
        jnp.kron(eye_n, jnp.eye(H, k=-1, dtype=jnp.float32)),        # row h <- t[h-1]
        jnp.kron(eye_n, jnp.eye(H, k=1, dtype=jnp.float32)),         # row h <- t[h+1]
    ])                                                               # (2, N*H, N*H)

    return (shifts, tile(a1), tile(b1), w1w, tile(a2), tile(b2), w2w, w3b, tile(bo))


# ----------------------------------------------------------------------------
# Wrappers
# ----------------------------------------------------------------------------
def residual_forward_slab(x_slab, kparams):
    """Core API: x_slab is the lane-dense (N*H, W*Cin) batch slab.
    Returns the (N*H, W*Cout) output slab (stay in this layout to chain blocks)."""
    shifts, a1, b1, w1w, a2, b2, w2w, w3b, bo = kparams
    NH, WCi = x_slab.shape
    WCo = w3b.shape[-1]

    return pl.pallas_call(
        _residual_kernel,
        out_shape=jax.ShapeDtypeStruct((NH, WCo), jnp.float32),
        grid_spec=pltpu.PrefetchScalarGridSpec(
            num_scalar_prefetch=0,
            grid=(1,),                                       # whole batch = one step
            in_specs=[
                pl.BlockSpec((NH, WCi), lambda i: (0, 0)),           # x slab
                pl.BlockSpec((2, NH, NH), lambda i: (0, 0, 0)),      # row-shift mats
                pl.BlockSpec((1, WCi), lambda i: (0, 0)),            # bn1 scale
                pl.BlockSpec((1, WCi), lambda i: (0, 0)),            # bn1 bias
                pl.BlockSpec((WCi, 3 * WCo), lambda i: (0, 0)),      # conv1 wide banded w
                pl.BlockSpec((1, WCo), lambda i: (0, 0)),            # bn2 scale
                pl.BlockSpec((1, WCo), lambda i: (0, 0)),            # bn2 bias (+conv1 b)
                pl.BlockSpec((WCo, 3 * WCo), lambda i: (0, 0)),      # conv2 wide banded w
                pl.BlockSpec((WCi, WCo), lambda i: (0, 0)),          # conv3 block-diag w
                pl.BlockSpec((1, WCo), lambda i: (0, 0)),            # conv2+conv3 bias
            ],
            out_specs=pl.BlockSpec((NH, WCo), lambda i: (0, 0)),
        ),
        compiler_params=pltpu.CompilerParams(
            dimension_semantics=("arbitrary",),
            vmem_limit_bytes=32 * 1024 * 1024),
    )(x_slab, shifts, a1, b1, w1w, a2, b2, w2w, w3b, bo)


def residual_forward(x_nchw, kparams, cout):
    """NCHW adapter matching the PyTorch interface.  The transposes here are
    wrapper-level layout plumbing only; chains of fused blocks should use
    residual_forward_slab directly and stay in the lane-dense layout."""
    N, Cin, H, W = x_nchw.shape
    x_slab = (jnp.transpose(x_nchw, (0, 2, 3, 1))
              .reshape(N * H, W * Cin).astype(jnp.float32))
    out = residual_forward_slab(x_slab, kparams)             # (N*H, W*Cout)
    return jnp.transpose(out.reshape(N, H, W, cout), (0, 3, 1, 2))


# ----------------------------------------------------------------------------
# Pure-JAX reference (eval-mode BN, NHWC convs via lax.conv)
# ----------------------------------------------------------------------------
def _reference(x_nchw, raw_params, eps=1e-3):
    (g1, be1, m1, v1, w1, cb1, g2, be2, m2, v2, w2, cb2, w3, cb3) = raw_params
    x = jnp.transpose(x_nchw, (0, 2, 3, 1)).astype(jnp.float32)

    def bn(t, g, b, m, v):
        return (t - m) / jnp.sqrt(v + eps) * g + b

    def conv(t, w, b, k):
        pad = [(k // 2, k // 2), (k // 2, k // 2)]
        y = lax.conv_general_dilated(
            t, w, window_strides=(1, 1), padding=pad,
            dimension_numbers=("NHWC", "HWIO", "NHWC"))
        return y + b.reshape(1, 1, 1, -1)

    t = jax.nn.relu(bn(x, g1, be1, m1, v1))
    y = conv(t, w1, cb1, 3)
    t = jax.nn.relu(bn(y, g2, be2, m2, v2))
    y = conv(t, w2, cb2, 3)
    sc = conv(x, w3.reshape(1, 1, *w3.shape), cb3, 1)
    return jnp.transpose(y + sc, (0, 3, 1, 2))


# ----------------------------------------------------------------------------
if __name__ == "__main__":
    # Small shapes consistent with the module: batch=2, in_channel=4,
    # num_channel=8, spatial=16x16, use_conv1x1=True, strides=1.
    N, Cin, Cout, H, W = 2, 4, 8, 16, 16
    eps = 1e-3

    key = jax.random.PRNGKey(0)
    ks = jax.random.split(key, 16)

    # BatchNorm parameters (running stats, inference mode)
    g1 = jax.random.normal(ks[0], (Cin,), jnp.float32) * 0.1 + 1.0
    be1 = jax.random.normal(ks[1], (Cin,), jnp.float32) * 0.1
    m1 = jax.random.normal(ks[2], (Cin,), jnp.float32) * 0.1
    v1 = jax.nn.softplus(jax.random.normal(ks[3], (Cin,), jnp.float32)) + 0.5
    g2 = jax.random.normal(ks[4], (Cout,), jnp.float32) * 0.1 + 1.0
    be2 = jax.random.normal(ks[5], (Cout,), jnp.float32) * 0.1
    m2 = jax.random.normal(ks[6], (Cout,), jnp.float32) * 0.1
    v2 = jax.nn.softplus(jax.random.normal(ks[7], (Cout,), jnp.float32)) + 0.5

    # Conv weights in HWIO layout, biases
    w1 = jax.random.normal(ks[8], (3, 3, Cin, Cout), jnp.float32) * 0.1
    cb1 = jax.random.normal(ks[9], (Cout,), jnp.float32) * 0.1
    w2 = jax.random.normal(ks[10], (3, 3, Cout, Cout), jnp.float32) * 0.1
    cb2 = jax.random.normal(ks[11], (Cout,), jnp.float32) * 0.1
    w3 = jax.random.normal(ks[12], (Cin, Cout), jnp.float32) * 0.1   # 1x1 conv
    cb3 = jax.random.normal(ks[13], (Cout,), jnp.float32) * 0.1

    raw_params = (g1, be1, m1, v1, w1, cb1, g2, be2, m2, v2, w2, cb2, w3, cb3)
    kparams = prepare_params(raw_params, N, H, W, eps)

    x = jax.random.normal(ks[14], (N, Cin, H, W), jnp.float32)

    out = jax.block_until_ready(residual_forward(x, kparams, Cout))
    ref = jax.block_until_ready(_reference(x, raw_params, eps))

    assert out.shape == (N, Cout, H, W), out.shape
    assert bool(jnp.allclose(out, ref, atol=2e-3, rtol=2e-3)), (
        float(jnp.max(jnp.abs(out - ref))))

    print("KERNEL_OK")
</pallas_src>

<mosaic_0001>
module attributes {stable_mosaic.version = 11 : i64} {
  func.func @_residual_kernel(%arg0: i32, %arg1: memref<32x64xf32, #tpu.memory_space<vmem>>, %arg2: memref<2x32x32xf32, #tpu.memory_space<vmem>>, %arg3: memref<1x64xf32, #tpu.memory_space<vmem>>, %arg4: memref<1x64xf32, #tpu.memory_space<vmem>>, %arg5: memref<64x384xf32, #tpu.memory_space<vmem>>, %arg6: memref<1x128xf32, #tpu.memory_space<vmem>>, %arg7: memref<1x128xf32, #tpu.memory_space<vmem>>, %arg8: memref<128x384xf32, #tpu.memory_space<vmem>>, %arg9: memref<64x128xf32, #tpu.memory_space<vmem>>, %arg10: memref<1x128xf32, #tpu.memory_space<vmem>>, %arg11: memref<32x128xf32, #tpu.memory_space<vmem>>) attributes {dimension_semantics = [#tpu.dimension_semantics<arbitrary>], iteration_bounds = array<i64: 1>, scalar_prefetch = 0 : i64, scratch_operands = 0 : i64, tpu.core_type = #tpu.core_type<tc>, window_params = [{pipeline_mode = #tpu.pipeline_mode<synchronous>, transform_indices = @transform_0, window_bounds = array<i64: 32, 64>}, {pipeline_mode = #tpu.pipeline_mode<synchronous>, transform_indices = @transform_1, window_bounds = array<i64: 2, 32, 32>}, {pipeline_mode = #tpu.pipeline_mode<synchronous>, transform_indices = @transform_2, window_bounds = array<i64: 1, 64>}, {pipeline_mode = #tpu.pipeline_mode<synchronous>, transform_indices = @transform_3, window_bounds = array<i64: 1, 64>}, {pipeline_mode = #tpu.pipeline_mode<synchronous>, transform_indices = @transform_4, window_bounds = array<i64: 64, 384>}, {pipeline_mode = #tpu.pipeline_mode<synchronous>, transform_indices = @transform_5, window_bounds = array<i64: 1, 128>}, {pipeline_mode = #tpu.pipeline_mode<synchronous>, transform_indices = @transform_6, window_bounds = array<i64: 1, 128>}, {pipeline_mode = #tpu.pipeline_mode<synchronous>, transform_indices = @transform_7, window_bounds = array<i64: 128, 384>}, {pipeline_mode = #tpu.pipeline_mode<synchronous>, transform_indices = @transform_8, window_bounds = array<i64: 64, 128>}, {pipeline_mode = #tpu.pipeline_mode<synchronous>, transform_indices = @transform_9, window_bounds = array<i64: 1, 128>}, {pipeline_mode = #tpu.pipeline_mode<synchronous>, transform_indices = @transform_10, window_bounds = array<i64: 32, 128>}]} {
    %c0 = arith.constant 0 : index
    %c0_0 = arith.constant 0 : index
    %0 = vector.load %arg1[%c0, %c0_0] : memref<32x64xf32, #tpu.memory_space<vmem>>, vector<32x64xf32>
    %c0_1 = arith.constant 0 : index
    %c0_2 = arith.constant 0 : index
    %c0_3 = arith.constant 0 : index
    %1 = vector.load %arg2[%c0_1, %c0_2, %c0_3] : memref<2x32x32xf32, #tpu.memory_space<vmem>>, vector<1x32x32xf32>
    %2 = vector.shape_cast %1 : vector<1x32x32xf32> to vector<32x32xf32>
    %c1 = arith.constant 1 : index
    %c0_4 = arith.constant 0 : index
    %c0_5 = arith.constant 0 : index
    %3 = vector.load %arg2[%c1, %c0_4, %c0_5] : memref<2x32x32xf32, #tpu.memory_space<vmem>>, vector<1x32x32xf32>
    %4 = vector.shape_cast %3 : vector<1x32x32xf32> to vector<32x32xf32>
    %c0_6 = arith.constant 0 : index
    %c0_7 = arith.constant 0 : index
    %5 = vector.load %arg3[%c0_6, %c0_7] : memref<1x64xf32, #tpu.memory_space<vmem>>, vector<1x64xf32>
    %6 = vector.broadcast %5 : vector<1x64xf32> to vector<32x64xf32>
    %7 = arith.mulf %0, %6 : vector<32x64xf32>
    %c0_8 = arith.constant 0 : index
    %c0_9 = arith.constant 0 : index
    %8 = vector.load %arg4[%c0_8, %c0_9] : memref<1x64xf32, #tpu.memory_space<vmem>>, vector<1x64xf32>
    %9 = vector.broadcast %8 : vector<1x64xf32> to vector<32x64xf32>
    %10 = arith.addf %7, %9 : vector<32x64xf32>
    %cst = arith.constant 0.000000e+00 : f32
    %11 = vector.broadcast %cst : f32 to vector<32x64xf32>
    %12 = arith.maximumf %10, %11 : vector<32x64xf32>
    %c0_10 = arith.constant 0 : index
    %c0_11 = arith.constant 0 : index
    %13 = vector.load %arg5[%c0_10, %c0_11] : memref<64x384xf32, #tpu.memory_space<vmem>>, vector<64x384xf32>
    %cst_12 = arith.constant dense<0.000000e+00> : vector<32x384xf32>
    %14 = tpu.matmul %12, %13, %cst_12 {dimension_numbers = #tpu.dot_dimension_numbers<[1], [0], [0], [1], [0, 0, 1, 1], [], []>} : vector<32x64xf32>, vector<64x384xf32>, vector<32x384xf32> -> vector<32x384xf32>
    %15 = vector.extract_strided_slice %14 {offsets = [0, 0], sizes = [32, 128], strides = [1, 1]} : vector<32x384xf32> to vector<32x128xf32>
    %16 = vector.extract_strided_slice %14 {offsets = [0, 128], sizes = [32, 128], strides = [1, 1]} : vector<32x384xf32> to vector<32x128xf32>
    %17 = vector.extract_strided_slice %14 {offsets = [0, 256], sizes = [32, 128], strides = [1, 1]} : vector<32x384xf32> to vector<32x128xf32>
    %cst_13 = arith.constant dense<0.000000e+00> : vector<32x128xf32>
    %18 = tpu.matmul %2, %15, %cst_13 {dimension_numbers = #tpu.dot_dimension_numbers<[1], [0], [0], [1], [0, 0, 1, 1], [], []>} : vector<32x32xf32>, vector<32x128xf32>, vector<32x128xf32> -> vector<32x128xf32>
    %19 = arith.addf %18, %16 : vector<32x128xf32>
    %cst_14 = arith.constant dense<0.000000e+00> : vector<32x128xf32>
    %20 = tpu.matmul %4, %17, %cst_14 {dimension_numbers = #tpu.dot_dimension_numbers<[1], [0], [0], [1], [0, 0, 1, 1], [], []>} : vector<32x32xf32>, vector<32x128xf32>, vector<32x128xf32> -> vector<32x128xf32>
    %21 = arith.addf %19, %20 : vector<32x128xf32>
    %c0_15 = arith.constant 0 : index
    %c0_16 = arith.constant 0 : index
    %22 = vector.load %arg6[%c0_15, %c0_16] : memref<1x128xf32, #tpu.memory_space<vmem>>, vector<1x128xf32>
    %23 = vector.broadcast %22 : vector<1x128xf32> to vector<32x128xf32>
    %24 = arith.mulf %21, %23 : vector<32x128xf32>
    %c0_17 = arith.constant 0 : index
    %c0_18 = arith.constant 0 : index
    %25 = vector.load %arg7[%c0_17, %c0_18] : memref<1x128xf32, #tpu.memory_space<vmem>>, vector<1x128xf32>
    %26 = vector.broadcast %25 : vector<1x128xf32> to vector<32x128xf32>
    %27 = arith.addf %24, %26 : vector<32x128xf32>
    %cst_19 = arith.constant 0.000000e+00 : f32
    %28 = vector.broadcast %cst_19 : f32 to vector<32x128xf32>
    %29 = arith.maximumf %27, %28 : vector<32x128xf32>
    %c0_20 = arith.constant 0 : index
    %c0_21 = arith.constant 0 : index
    %30 = vector.load %arg8[%c0_20, %c0_21] : memref<128x384xf32, #tpu.memory_space<vmem>>, vector<128x384xf32>
    %cst_22 = arith.constant dense<0.000000e+00> : vector<32x384xf32>
    %31 = tpu.matmul %29, %30, %cst_22 {dimension_numbers = #tpu.dot_dimension_numbers<[1], [0], [0], [1], [0, 0, 1, 1], [], []>} : vector<32x128xf32>, vector<128x384xf32>, vector<32x384xf32> -> vector<32x384xf32>
    %32 = vector.extract_strided_slice %31 {offsets = [0, 0], sizes = [32, 128], strides = [1, 1]} : vector<32x384xf32> to vector<32x128xf32>
    %33 = vector.extract_strided_slice %31 {offsets = [0, 128], sizes = [32, 128], strides = [1, 1]} : vector<32x384xf32> to vector<32x128xf32>
    %34 = vector.extract_strided_slice %31 {offsets = [0, 256], sizes = [32, 128], strides = [1, 1]} : vector<32x384xf32> to vector<32x128xf32>
    %cst_23 = arith.constant dense<0.000000e+00> : vector<32x128xf32>
    %35 = tpu.matmul %2, %32, %cst_23 {dimension_numbers = #tpu.dot_dimension_numbers<[1], [0], [0], [1], [0, 0, 1, 1], [], []>} : vector<32x32xf32>, vector<32x128xf32>, vector<32x128xf32> -> vector<32x128xf32>
    %36 = arith.addf %35, %33 : vector<32x128xf32>
    %cst_24 = arith.constant dense<0.000000e+00> : vector<32x128xf32>
    %37 = tpu.matmul %4, %34, %cst_24 {dimension_numbers = #tpu.dot_dimension_numbers<[1], [0], [0], [1], [0, 0, 1, 1], [], []>} : vector<32x32xf32>, vector<32x128xf32>, vector<32x128xf32> -> vector<32x128xf32>
    %38 = arith.addf %36, %37 : vector<32x128xf32>
    %c0_25 = arith.constant 0 : index
    %c0_26 = arith.constant 0 : index
    %39 = vector.load %arg9[%c0_25, %c0_26] : memref<64x128xf32, #tpu.memory_space<vmem>>, vector<64x128xf32>
    %cst_27 = arith.constant dense<0.000000e+00> : vector<32x128xf32>
    %40 = tpu.matmul %0, %39, %cst_27 {dimension_numbers = #tpu.dot_dimension_numbers<[1], [0], [0], [1], [0, 0, 1, 1], [], []>} : vector<32x64xf32>, vector<64x128xf32>, vector<32x128xf32> -> vector<32x128xf32>
    %41 = arith.addf %38, %40 : vector<32x128xf32>
    %c0_28 = arith.constant 0 : index
    %c0_29 = arith.constant 0 : index
    %42 = vector.load %arg10[%c0_28, %c0_29] : memref<1x128xf32, #tpu.memory_space<vmem>>, vector<1x128xf32>
    %43 = vector.broadcast %42 : vector<1x128xf32> to vector<32x128xf32>
    %44 = arith.addf %41, %43 : vector<32x128xf32>
    %c0_30 = arith.constant 0 : index
    %c0_31 = arith.constant 0 : index
    %45 = vector.load %arg11[%c0_30, %c0_31] : memref<32x128xf32, #tpu.memory_space<vmem>>, vector<32x128xf32>
    tpu.vector_store %arg11[%c0_30, %c0_31], %44 {strides = array<i32>} : memref<32x128xf32, #tpu.memory_space<vmem>>, vector<32x128xf32>,
    return
  }
  func.func @transform_0(%arg0: i32) -> (i32, i32) {
    %c0_i32 = arith.constant 0 : i32
    %c0_i32_0 = arith.constant 0 : i32
    %c0_i32_1 = arith.constant 0 : i32
    return %c0_i32, %c0_i32_0 : i32, i32
  }
  func.func @transform_1(%arg0: i32) -> (i32, i32, i32) {
    %c0_i32 = arith.constant 0 : i32
    %c0_i32_0 = arith.constant 0 : i32
    %c0_i32_1 = arith.constant 0 : i32
    %c0_i32_2 = arith.constant 0 : i32
    return %c0_i32, %c0_i32_0, %c0_i32_1 : i32, i32, i32
  }
  func.func @transform_2(%arg0: i32) -> (i32, i32) {
    %c0_i32 = arith.constant 0 : i32
    %c0_i32_0 = arith.constant 0 : i32
    %c0_i32_1 = arith.constant 0 : i32
    return %c0_i32, %c0_i32_0 : i32, i32
  }
  func.func @transform_3(%arg0: i32) -> (i32, i32) {
    %c0_i32 = arith.constant 0 : i32
    %c0_i32_0 = arith.constant 0 : i32
    %c0_i32_1 = arith.constant 0 : i32
    return %c0_i32, %c0_i32_0 : i32, i32
  }
  func.func @transform_4(%arg0: i32) -> (i32, i32) {
    %c0_i32 = arith.constant 0 : i32
    %c0_i32_0 = arith.constant 0 : i32
    %c0_i32_1 = arith.constant 0 : i32
    return %c0_i32, %c0_i32_0 : i32, i32
  }
  func.func @transform_5(%arg0: i32) -> (i32, i32) {
    %c0_i32 = arith.constant 0 : i32
    %c0_i32_0 = arith.constant 0 : i32
    %c0_i32_1 = arith.constant 0 : i32
    return %c0_i32, %c0_i32_0 : i32, i32
  }
  func.func @transform_6(%arg0: i32) -> (i32, i32) {
    %c0_i32 = arith.constant 0 : i32
    %c0_i32_0 = arith.constant 0 : i32
    %c0_i32_1 = arith.constant 0 : i32
    return %c0_i32, %c0_i32_0 : i32, i32
  }
  func.func @transform_7(%arg0: i32) -> (i32, i32) {
    %c0_i32 = arith.constant 0 : i32
    %c0_i32_0 = arith.constant 0 : i32
    %c0_i32_1 = arith.constant 0 : i32
    return %c0_i32, %c0_i32_0 : i32, i32
  }
  func.func @transform_8(%arg0: i32) -> (i32, i32) {
    %c0_i32 = arith.constant 0 : i32
    %c0_i32_0 = arith.constant 0 : i32
    %c0_i32_1 = arith.constant 0 : i32
    return %c0_i32, %c0_i32_0 : i32, i32
  }
  func.func @transform_9(%arg0: i32) -> (i32, i32) {
    %c0_i32 = arith.constant 0 : i32
    %c0_i32_0 = arith.constant 0 : i32
    %c0_i32_1 = arith.constant 0 : i32
    return %c0_i32, %c0_i32_0 : i32, i32
  }
  func.func @transform_10(%arg0: i32) -> (i32, i32) {
    %c0_i32 = arith.constant 0 : i32
    %c0_i32_0 = arith.constant 0 : i32
    %c0_i32_1 = arith.constant 0 : i32
    return %c0_i32, %c0_i32_0 : i32, i32
  }
}

</mosaic_0001>

<llo_original>
// kernel: tpu_custom_call.1
$region0: #{tpu_custom_call.1}
  #allocation0 [shape = 'u32[]', space=smem, size = 0x4, offset = 0x4, fixed_abs, tag = 'smem constant byte address 0x4 - core index']
  #allocation1 [shape = 'u32[144,128]{1,0:T(1,128)}', space=vmem, size = 0x12000, scoped, tag = 'internal scratch']
  %s0 = inlined_call_operand.hbm [shape: f32[32,64], index: 0, kind: input, shape index: {}]
  %s1 = inlined_call_operand.hbm [shape: f32[2,32,32], index: 1, kind: input, shape index: {}]
  %s2 = inlined_call_operand.vmem [shape: f32[1,64], index: 2, kind: input, shape index: {}]
  %s3 = inlined_call_operand.vmem [shape: f32[1,64], index: 3, kind: input, shape index: {}]
  %s4 = inlined_call_operand.hbm [shape: f32[64,384], index: 4, kind: input, shape index: {}]
  %s5 = inlined_call_operand.vmem [shape: f32[1,128], index: 5, kind: input, shape index: {}]
  %s6 = inlined_call_operand.vmem [shape: f32[1,128], index: 6, kind: input, shape index: {}]
  %s7 = inlined_call_operand.hbm [shape: f32[128,384], index: 7, kind: input, shape index: {}]
  %s8 = inlined_call_operand.hbm [shape: f32[64,128], index: 8, kind: input, shape index: {}]
  %s9 = inlined_call_operand.vmem [shape: f32[1,128], index: 9, kind: input, shape index: {}]
  %s10 = inlined_call_operand.hbm [shape: f32[32,128], index: 10, kind: output, shape index: {}]
  %s11 = sld [smem:[#allocation0]]
  $region70: #{tpu_custom_call.1} parent=0
    _
  %s13 = ssub.s32 1, %s11
  %s14 = scalar_select 0, %s13, %s11
  $region1: #{tpu_custom_call.1} parent=0
    #allocation2 [shape = 'u8[16384]{0}', space=vmem, size = 0x4000, scoped, tag = 'input window, operand 0, single buffered']
    #allocation3 [shape = 's32[1]{0}', space=sflag, size = 0x4, scoped, tag = 'scoped memory for tpu_custom_call.1']
    #allocation4 [shape = 's32[1]{0}', space=sflag, size = 0x4, scoped, tag = 'scoped memory for tpu_custom_call.1']
    #allocation5 [shape = 'u8[32768]{0}', space=vmem, size = 0x8000, scoped, tag = 'input window, operand 1, single buffered']
    #allocation6 [shape = 's32[1]{0}', space=sflag, size = 0x4, scoped, tag = 'scoped memory for tpu_custom_call.1']
    #allocation7 [shape = 'u8[98304]{0}', space=vmem, size = 0x18000, scoped, tag = 'input window, operand 4, single buffered']
    #allocation8 [shape = 'u8[196608]{0}', space=vmem, size = 0x30000, scoped, tag = 'input window, operand 7, single buffered']
    #allocation9 [shape = 's32[1]{0}', space=sflag, size = 0x4, scoped, tag = 'scoped memory for tpu_custom_call.1']
    #allocation10 [shape = 'u8[32768]{0}', space=vmem, size = 0x8000, scoped, tag = 'input window, operand 8, single buffered']
    #allocation11 [shape = 'u8[16384]{0}', space=vmem, size = 0x4000, scoped, tag = 'output window, operand 0, single buffered']
    %15 = vsyncpa [#allocation3], 0
    %16 = vsyncpa [#allocation6], 0
    %17 = vsyncpa [#allocation9], 0
    %18 = vsyncpa [#allocation4], 0
    // Predicated region
    $region2: #{tpu_custom_call.1} parent=1 // pred_check
      _
    $region3: #{tpu_custom_call.1} parent=1 // pred_check_branch
      %20 = sbr.rel (0) target = $region5
    $region4: #{tpu_custom_call.1} parent=1 // pred_region
      %s22 = ssub.s32 512, 512
      %23 = vsyncadd [#allocation3], %s22
      %s24 = sshll.u32 [#allocation2], 4
      %s25 = int_to_ptr.vmem [resolvable:$true] %s24
      %30 = dma.hbm_to_vmem [thread:$0]  %s0, 512, %s25, [#allocation3], 128, 128, 8
    $region5: #{tpu_custom_call.1} parent=1 // pred_fallthru
      _
    // Predicated region
    $region6: #{tpu_custom_call.1} parent=1 // pred_check
      _
    $region7: #{tpu_custom_call.1} parent=1 // pred_check_branch
      %32 = sbr.rel (0) target = $region9
    $region8: #{tpu_custom_call.1} parent=1 // pred_region
      %s34 = ssub.s32 1024, 1024
      %35 = vsyncadd [#allocation6], %s34
      %s36 = sshll.u32 [#allocation5], 4
      %s37 = int_to_ptr.vmem [resolvable:$true] %s36
      %42 = dma.hbm_to_vmem [thread:$0]  %s1, 1024, %s37, [#allocation6], 128, 128, 8
    $region9: #{tpu_custom_call.1} parent=1 // pred_fallthru
      _
    // Predicated region
    $region10: #{tpu_custom_call.1} parent=1 // pred_check
      _
    $region11: #{tpu_custom_call.1} parent=1 // pred_check_branch
      %44 = sbr.rel (0) target = $region13
    $region12: #{tpu_custom_call.1} parent=1 // pred_region
      _
    $region13: #{tpu_custom_call.1} parent=1 // pred_fallthru
      _
    // Predicated region
    $region14: #{tpu_custom_call.1} parent=1 // pred_check
      _
    $region15: #{tpu_custom_call.1} parent=1 // pred_check_branch
      %46 = sbr.rel (0) target = $region17
    $region16: #{tpu_custom_call.1} parent=1 // pred_region
      _
    $region17: #{tpu_custom_call.1} parent=1 // pred_fallthru
      _
    // Predicated region
    $region18: #{tpu_custom_call.1} parent=1 // pred_check
      _
    $region19: #{tpu_custom_call.1} parent=1 // pred_check_branch
      %48 = sbr.rel (0) target = $region21
    $region20: #{tpu_custom_call.1} parent=1 // pred_region
      %s50 = ssub.s32 3072, 3072
      %51 = vsyncadd [#allocation6], %s50
      %s52 = sshll.u32 [#allocation7], 4
      %s53 = int_to_ptr.vmem [resolvable:$true] %s52
      %58 = dma.hbm_to_vmem [thread:$0]  %s4, 3072, %s53, [#allocation6], 384, 384, 24
    $region21: #{tpu_custom_call.1} parent=1 // pred_fallthru
      _
    // Predicated region
    $region22: #{tpu_custom_call.1} parent=1 // pred_check
      _
    $region23: #{tpu_custom_call.1} parent=1 // pred_check_branch
      %60 = sbr.rel (0) target = $region25
    $region24: #{tpu_custom_call.1} parent=1 // pred_region
      _
    $region25: #{tpu_custom_call.1} parent=1 // pred_fallthru
      _
    // Predicated region
    $region26: #{tpu_custom_call.1} parent=1 // pred_check
      _
    $region27: #{tpu_custom_call.1} parent=1 // pred_check_branch
      %62 = sbr.rel (0) target = $region29
    $region28: #{tpu_custom_call.1} parent=1 // pred_region
      _
    $region29: #{tpu_custom_call.1} parent=1 // pred_fallthru
      _
    // Predicated region
    $region30: #{tpu_custom_call.1} parent=1 // pred_check
      _
    $region31: #{tpu_custom_call.1} parent=1 // pred_check_branch
      %64 = sbr.rel (0) target = $region33
    $region32: #{tpu_custom_call.1} parent=1 // pred_region
      %s66 = ssub.s32 6144, 6144
      %67 = vsyncadd [#allocation9], %s66
      %s68 = sshll.u32 [#allocation8], 4
      %s69 = int_to_ptr.vmem [resolvable:$true] %s68
      %74 = dma.hbm_to_vmem [thread:$0]  %s7, 6144, %s69, [#allocation9], 384, 384, 24
    $region33: #{tpu_custom_call.1} parent=1 // pred_fallthru
      _
    // Predicated region
    $region34: #{tpu_custom_call.1} parent=1 // pred_check
      _
    $region35: #{tpu_custom_call.1} parent=1 // pred_check_branch
      %76 = sbr.rel (0) target = $region37
    $region36: #{tpu_custom_call.1} parent=1 // pred_region
      %s78 = ssub.s32 1024, 1024
      %79 = vsyncadd [#allocation9], %s78
      %s80 = sshll.u32 [#allocation10], 4
      %s81 = int_to_ptr.vmem [resolvable:$true] %s80
      %86 = dma.hbm_to_vmem [thread:$0]  %s8, 1024, %s81, [#allocation9], 128, 128, 8
    $region37: #{tpu_custom_call.1} parent=1 // pred_fallthru
      _
    // Predicated region
    $region38: #{tpu_custom_call.1} parent=1 // pred_check
      _
    $region39: #{tpu_custom_call.1} parent=1 // pred_check_branch
      %88 = sbr.rel (0) target = $region41
    $region40: #{tpu_custom_call.1} parent=1 // pred_region
      _
    $region41: #{tpu_custom_call.1} parent=1 // pred_fallthru
      _
    // Predicated region
    $region42: #{tpu_custom_call.1} parent=1 // pred_check
      _
    $region43: #{tpu_custom_call.1} parent=1 // pred_check_branch
      %90 = sbr.rel (0) target = $region45
    $region44: #{tpu_custom_call.1} parent=1 // pred_region
      %91 = dma.done [#allocation3], 512
    $region45: #{tpu_custom_call.1} parent=1 // pred_fallthru
      _
    // Predicated region
    $region46: #{tpu_custom_call.1} parent=1 // pred_check
      _
    $region47: #{tpu_custom_call.1} parent=1 // pred_check_branch
      %93 = sbr.rel (0) target = $region49
    $region48: #{tpu_custom_call.1} parent=1 // pred_region
      %94 = dma.done [#allocation6], 1024
    $region49: #{tpu_custom_call.1} parent=1 // pred_fallthru
      _
    // Predicated region
    $region50: #{tpu_custom_call.1} parent=1 // pred_check
      _
    $region51: #{tpu_custom_call.1} parent=1 // pred_check_branch
      %96 = sbr.rel (0) target = $region53
    $region52: #{tpu_custom_call.1} parent=1 // pred_region
      %97 = dma.done [#allocation6], 3072
    $region53: #{tpu_custom_call.1} parent=1 // pred_fallthru
      _
    // Predicated region
    $region54: #{tpu_custom_call.1} parent=1 // pred_check
      _
    $region55: #{tpu_custom_call.1} parent=1 // pred_check_branch
      %99 = sbr.rel (0) target = $region57
    $region56: #{tpu_custom_call.1} parent=1 // pred_region
      %100 = dma.done [#allocation9], 6144
    $region57: #{tpu_custom_call.1} parent=1 // pred_fallthru
      _
    // Predicated region
    $region58: #{tpu_custom_call.1} parent=1 // pred_check
      _
    $region59: #{tpu_custom_call.1} parent=1 // pred_check_branch
      %102 = sbr.rel (0) target = $region61
    $region60: #{tpu_custom_call.1} parent=1 // pred_region
      %103 = dma.done [#allocation9], 1024
    $region61: #{tpu_custom_call.1} parent=1 // pred_fallthru
      _
    %v104 = vld [vmem:[#allocation2] sm:$0xff]
    %v105 = vld [vmem:[#allocation2 + $0x8] sm:$0xff]
    %v106 = vld [vmem:[#allocation2 + $0x10] sm:$0xff]
    %v107 = vld [vmem:[#allocation2 + $0x18] sm:$0xff]
    %v108 = vld [vmem:[#allocation5] sm:$0xff]
    %v109 = vld [vmem:[#allocation5 + $0x8] sm:$0xff]
    %v110 = vld [vmem:[#allocation5 + $0x10] sm:$0xff]
    %v111 = vld [vmem:[#allocation5 + $0x18] sm:$0xff]
    %s112 = scalar_lea.vmem [#allocation5], 32
    %v113 = vld [vmem:[%s112] sm:$0xff]
    %v114 = vld [vmem:[%s112 + $0x8] sm:$0xff]
    %v115 = vld [vmem:[%s112 + $0x10] sm:$0xff]
    %v116 = vld [vmem:[%s112 + $0x18] sm:$0xff]
    %v117 = vld [vmem:[%s2] sm:$0x1]
    %v119 = vlaneseq
    %v120 = vshrl.u32 %v119, 7
    %v121 = vsub.s32 0, %v120
    %v122 = vrot.slane %v117, %v121
    %v124 = vmul.f32 %v104, %v122
    %v125 = vmul.f32 %v105, %v122
    %v126 = vmul.f32 %v106, %v122
    %v127 = vmul.f32 %v107, %v122
    %v128 = vld [vmem:[%s3] sm:$0x1]
    %v130 = vlaneseq
    %v131 = vshrl.u32 %v130, 7
    %v132 = vsub.s32 0, %v131
    %v133 = vrot.slane %v128, %v132
    %v135 = vadd.f32 %v124, %v133
    %v136 = vadd.f32 %v125, %v133
    %v137 = vadd.f32 %v126, %v133
    %v138 = vadd.f32 %v127, %v133
    %v139 = vmax.f32 %v135, 0.0
    %v140 = vmax.f32 %v136, 0.0
    %v141 = vmax.f32 %v137, 0.0
    %v142 = vmax.f32 %v138, 0.0
    %v143 = vld [vmem:[#allocation7] sm:$0xff]
    %v144 = vld [vmem:[#allocation7 + $0x8] sm:$0xff]
    %v145 = vld [vmem:[#allocation7 + $0x10] sm:$0xff]
    %v146 = vld [vmem:[#allocation7 + $0x18] sm:$0xff]
    %v147 = vld [vmem:[#allocation7 + $0x20] sm:$0xff]
    %v148 = vld [vmem:[#allocation7 + $0x28] sm:$0xff]
    %v149 = vld [vmem:[#allocation7 + $0x30] sm:$0xff]
    %v150 = vld [vmem:[#allocation7 + $0x38] sm:$0xff]
    %v151 = vld [vmem:[#allocation7 + $0x40] sm:$0xff]
    %v152 = vld [vmem:[#allocation7 + $0x48] sm:$0xff]
    %v153 = vld [vmem:[#allocation7 + $0x50] sm:$0xff]
    %v154 = vld [vmem:[#allocation7 + $0x58] sm:$0xff]
    %v155 = vld [vmem:[#allocation7 + $0x60] sm:$0xff]
    %v156 = vld [vmem:[#allocation7 + $0x68] sm:$0xff]
    %v157 = vld [vmem:[#allocation7 + $0x70] sm:$0xff]
    %v158 = vld [vmem:[#allocation7 + $0x78] sm:$0xff]
    %v159 = vld [vmem:[#allocation7 + $0x80] sm:$0xff]
    %v160 = vld [vmem:[#allocation7 + $0x88] sm:$0xff]
    %v161 = vld [vmem:[#allocation7 + $0x90] sm:$0xff]
    %v162 = vld [vmem:[#allocation7 + $0x98] sm:$0xff]
    %v163 = vld [vmem:[#allocation7 + $0xa0] sm:$0xff]
    %v164 = vld [vmem:[#allocation7 + $0xa8] sm:$0xff]
    %v165 = vld [vmem:[#allocation7 + $0xb0] sm:$0xff]
    %v166 = vld [vmem:[#allocation7 + $0xb8] sm:$0xff]
    %vm167 = vcmask 523264
    %v169 = vsel %vm167, %v139, 0
    %v172 = vsel %vm167, %v140, 0
    %v175 = vsel %vm167, %v141, 0
    %v178 = vsel %vm167, %v142, 0
    %180 = vmatprep.subr.mxu0 %v144
    %181 = vmatpush1.msra.mxu0 %v143
    %182 = vmatprep.subr.mxu0 %v147
    %183 = vmatpush1.msra.mxu0 %v146
    %184 = vmatprep.subr.mxu0 %v150
    %185 = vmatpush1.msra.mxu0 %v149
    %186 = vmatprep.subr.mxu0 %v153
    %187 = vmatpush1.msra.mxu0 %v152
    %188 = vmatprep.subr.mxu0 %v156
    %189 = vmatpush1.msra.mxu0 %v155
    %190 = vmatprep.subr.mxu0 %v159
    %191 = vmatpush1.msra.mxu0 %v158
    %192 = vmatprep.subr.mxu0 %v162
    %193 = vmatpush1.msra.mxu0 %v161
    %194 = vmatprep.subr.mxu0 %v165
    %195 = vmatpush1.msra.mxu0 %v164
    %196 = vmatprep.subr.mxu0 0.0
    %197 = vmatpush1.msra.mxu0 0.0
    %198 = vmatprep.subr.mxu0 0.0
    %199 = vmatpush1.msra.mxu0 0.0
    %200 = vmatprep.subr.mxu0 0.0
    %201 = vmatpush1.msra.mxu0 0.0
    %202 = vmatprep.subr.mxu0 0.0
    %203 = vmatpush1.msra.mxu0 0.0
    %204 = vmatprep.subr.mxu0 0.0
    %205 = vmatpush1.msra.mxu0 0.0
    %206 = vmatprep.subr.mxu0 0.0
    %207 = vmatpush1.msra.mxu0 0.0
    %208 = vmatprep.subr.mxu0 0.0
    %209 = vmatpush1.msra.mxu0 0.0
    %210 = vmatprep.subr.mxu0 0.0
    %211 = vmatpush1.msra.mxu0 0.0
    %212 = vmatprep.subr.mxu0 0.0
    %213 = vmatpush1.msra.mxu0 0.0
    %214 = vmatprep.subr.mxu0 0.0
    %215 = vmatpush1.msra.mxu0 0.0
    %216 = vmatprep.subr.mxu0 0.0
    %217 = vmatpush1.msra.mxu0 0.0
    %218 = vmatprep.subr.mxu0 0.0
    %219 = vmatpush1.msra.mxu0 0.0
    %220 = vmatprep.subr.mxu0 0.0
    %221 = vmatpush1.msra.mxu0 0.0
    %222 = vmatprep.subr.mxu0 0.0
    %223 = vmatpush1.msra.mxu0 0.0
    %224 = vmatprep.subr.mxu0 0.0
    %225 = vmatpush1.msra.mxu0 0.0
    %226 = vmatprep.subr.mxu0 0.0
    %227 = vmatpush1.msra.mxu0 0.0
    %228 = vmatprep.subr.mxu0 0.0
    %229 = vmatpush1.msra.mxu0 0.0
    %230 = vmatprep.subr.mxu0 0.0
    %231 = vmatpush1.msra.mxu0 0.0
    %232 = vmatprep.subr.mxu0 0.0
    %233 = vmatpush1.msra.mxu0 0.0
    %234 = vmatprep.subr.mxu0 0.0
    %235 = vmatpush1.msra.mxu0 0.0
    %236 = vmatprep.subr.mxu0 0.0
    %237 = vmatpush1.msra.mxu0 0.0
    %238 = vmatprep.subr.mxu0 0.0
    %239 = vmatpush1.msra.mxu0 0.0
    %240 = vmatprep.subr.mxu0 0.0
    %241 = vmatpush1.msra.mxu0 0.0
    %242 = vmatprep.subr.mxu0 0.0
    %243 = vmatpush1.msra.mxu0 0.0
    %244 = vmatprep.mubr.f32.mxu0 0.0
    %245 = vmatmul.mubr.f32.gmra.mrb[0].mxu0 %v169
    %v246 = vpop.f32.mrb[0].mxu0
    %v247 = vadd.f32 0.0, %v246
    %v248 = vpop.f32.mrb[0].mxu0
    %v249 = vadd.f32 0.0, %v248
    %250 = vmatprep.mubr.f32.mxu0 0.0
    %251 = vmatmul.mubr.f32.gmra.mrb[0].mxu0 %v172
    %v252 = vpop.f32.mrb[0].mxu0
    %v253 = vadd.f32 0.0, %v252
    %v254 = vpop.f32.mrb[0].mxu0
    %v255 = vadd.f32 0.0, %v254
    %256 = vmatprep.mubr.f32.mxu0 0.0
    %257 = vmatmul.mubr.f32.gmra.mrb[0].mxu0 %v175
    %v258 = vpop.f32.mrb[0].mxu0
    %v259 = vadd.f32 0.0, %v258
    %v260 = vpop.f32.mrb[0].mxu0
    %v261 = vadd.f32 0.0, %v260
    %262 = vmatprep.mubr.f32.mxu0 0.0
    %263 = vmatmul.mubr.f32.gmra.mrb[0].mxu0 %v178
    %v264 = vpop.f32.mrb[0].mxu0
    %v265 = vadd.f32 0.0, %v264
    %v266 = vpop.f32.mrb[0].mxu0
    %v267 = vadd.f32 0.0, %v266
    %268 = vdwg.mxu0
    %269 = vmatprep.subr.mxu0 0.0
    %270 = vmatpush1.msra.mxu0 %v145
    %271 = vmatprep.subr.mxu0 0.0
    %272 = vmatpush1.msra.mxu0 %v148
    %273 = vmatprep.subr.mxu0 0.0
    %274 = vmatpush1.msra.mxu0 %v151
    %275 = vmatprep.subr.mxu0 0.0
    %276 = vmatpush1.msra.mxu0 %v154
    %277 = vmatprep.subr.mxu0 0.0
    %278 = vmatpush1.msra.mxu0 %v157
    %279 = vmatprep.subr.mxu0 0.0
    %280 = vmatpush1.msra.mxu0 %v160
    %281 = vmatprep.subr.mxu0 0.0
    %282 = vmatpush1.msra.mxu0 %v163
    %283 = vmatprep.subr.mxu0 0.0
    %284 = vmatpush1.msra.mxu0 %v166
    %285 = vmatprep.subr.mxu0 0.0
    %286 = vmatpush1.msra.mxu0 0.0
    %287 = vmatprep.subr.mxu0 0.0
    %288 = vmatpush1.msra.mxu0 0.0
    %289 = vmatprep.subr.mxu0 0.0
    %290 = vmatpush1.msra.mxu0 0.0
    %291 = vmatprep.subr.mxu0 0.0
    %292 = vmatpush1.msra.mxu0 0.0
    %293 = vmatprep.subr.mxu0 0.0
    %294 = vmatpush1.msra.mxu0 0.0
    %295 = vmatprep.subr.mxu0 0.0
    %296 = vmatpush1.msra.mxu0 0.0
    %297 = vmatprep.subr.mxu0 0.0
    %298 = vmatpush1.msra.mxu0 0.0
    %299 = vmatprep.subr.mxu0 0.0
    %300 = vmatpush1.msra.mxu0 0.0
    %301 = vmatprep.subr.mxu0 0.0
    %302 = vmatpush1.msra.mxu0 0.0
    %303 = vmatprep.subr.mxu0 0.0
    %304 = vmatpush1.msra.mxu0 0.0
    %305 = vmatprep.subr.mxu0 0.0
    %306 = vmatpush1.msra.mxu0 0.0
    %307 = vmatprep.subr.mxu0 0.0
    %308 = vmatpush1.msra.mxu0 0.0
    %309 = vmatprep.subr.mxu0 0.0
    %310 = vmatpush1.msra.mxu0 0.0
    %311 = vmatprep.subr.mxu0 0.0
    %312 = vmatpush1.msra.mxu0 0.0
    %313 = vmatprep.subr.mxu0 0.0
    %314 = vmatpush1.msra.mxu0 0.0
    %315 = vmatprep.subr.mxu0 0.0
    %316 = vmatpush1.msra.mxu0 0.0
    %317 = vmatprep.subr.mxu0 0.0
    %318 = vmatpush1.msra.mxu0 0.0
    %319 = vmatprep.subr.mxu0 0.0
    %320 = vmatpush1.msra.mxu0 0.0
    %321 = vmatprep.subr.mxu0 0.0
    %322 = vmatpush1.msra.mxu0 0.0
    %323 = vmatprep.subr.mxu0 0.0
    %324 = vmatpush1.msra.mxu0 0.0
    %325 = vmatprep.subr.mxu0 0.0
    %326 = vmatpush1.msra.mxu0 0.0
    %327 = vmatprep.subr.mxu0 0.0
    %328 = vmatpush1.msra.mxu0 0.0
    %329 = vmatprep.subr.mxu0 0.0
    %330 = vmatpush1.msra.mxu0 0.0
    %331 = vmatprep.subr.mxu0 0.0
    %332 = vmatpush1.msra.mxu0 0.0
    %333 = vmatprep.mubr.f32.mxu0 0.0
    %334 = vmatmul.mubr.f32.gmra.mrb[0].mxu0 %v169
    %v335 = vpop.f32.mrb[0].mxu0
    %v336 = vadd.f32 0.0, %v335
    %v337 = vpop.f32.mrb[0].mxu0
    %338 = vmatprep.mubr.f32.mxu0 0.0
    %339 = vmatmul.mubr.f32.gmra.mrb[0].mxu0 %v172
    %v340 = vpop.f32.mrb[0].mxu0
    %v341 = vadd.f32 0.0, %v340
    %v342 = vpop.f32.mrb[0].mxu0
    %343 = vmatprep.mubr.f32.mxu0 0.0
    %344 = vmatmul.mubr.f32.gmra.mrb[0].mxu0 %v175
    %v345 = vpop.f32.mrb[0].mxu0
    %v346 = vadd.f32 0.0, %v345
    %v347 = vpop.f32.mrb[0].mxu0
    %348 = vmatprep.mubr.f32.mxu0 0.0
    %349 = vmatmul.mubr.f32.gmra.mrb[0].mxu0 %v178
    %v350 = vpop.f32.mrb[0].mxu0
    %v351 = vadd.f32 0.0, %v350
    %v352 = vpop.f32.mrb[0].mxu0
    %353 = vdwg.mxu0
    %vm354 = vcmask 261120
    %v356 = vsel %vm354, %v108, 0
    %v359 = vsel %vm354, %v109, 0
    %v362 = vsel %vm354, %v110, 0
    %v365 = vsel %vm354, %v111, 0
    %367 = vmatprep.subr.mxu0 0.0
    %368 = vmatpush1.msra.mxu0 %v247
    %369 = vmatprep.subr.mxu0 0.0
    %370 = vmatpush1.msra.mxu0 %v253
    %371 = vmatprep.subr.mxu0 0.0
    %372 = vmatpush1.msra.mxu0 %v259
    %373 = vmatprep.subr.mxu0 0.0
    %374 = vmatpush1.msra.mxu0 %v265
    %375 = vmatprep.subr.mxu0 0.0
    %376 = vmatpush1.msra.mxu0 0.0
    %377 = vmatprep.subr.mxu0 0.0
    %378 = vmatpush1.msra.mxu0 0.0
    %379 = vmatprep.subr.mxu0 0.0
    %380 = vmatpush1.msra.mxu0 0.0
    %381 = vmatprep.subr.mxu0 0.0
    %382 = vmatpush1.msra.mxu0 0.0
    %383 = vmatprep.subr.mxu0 0.0
    %384 = vmatpush1.msra.mxu0 0.0
    %385 = vmatprep.subr.mxu0 0.0
    %386 = vmatpush1.msra.mxu0 0.0
    %387 = vmatprep.subr.mxu0 0.0
    %388 = vmatpush1.msra.mxu0 0.0
    %389 = vmatprep.subr.mxu0 0.0
    %390 = vmatpush1.msra.mxu0 0.0
    %391 = vmatprep.subr.mxu0 0.0
    %392 = vmatpush1.msra.mxu0 0.0
    %393 = vmatprep.subr.mxu0 0.0
    %394 = vmatpush1.msra.mxu0 0.0
    %395 = vmatprep.subr.mxu0 0.0
    %396 = vmatpush1.msra.mxu0 0.0
    %397 = vmatprep.subr.mxu0 0.0
    %398 = vmatpush1.msra.mxu0 0.0
    %399 = vmatprep.subr.mxu0 0.0
    %400 = vmatpush1.msra.mxu0 0.0
    %401 = vmatprep.subr.mxu0 0.0
    %402 = vmatpush1.msra.mxu0 0.0
    %403 = vmatprep.subr.mxu0 0.0
    %404 = vmatpush1.msra.mxu0 0.0
    %405 = vmatprep.subr.mxu0 0.0
    %406 = vmatpush1.msra.mxu0 0.0
    %407 = vmatprep.subr.mxu0 0.0
    %408 = vmatpush1.msra.mxu0 0.0
    %409 = vmatprep.subr.mxu0 0.0
    %410 = vmatpush1.msra.mxu0 0.0
    %411 = vmatprep.subr.mxu0 0.0
    %412 = vmatpush1.msra.mxu0 0.0
    %413 = vmatprep.subr.mxu0 0.0
    %414 = vmatpush1.msra.mxu0 0.0
    %415 = vmatprep.subr.mxu0 0.0
    %416 = vmatpush1.msra.mxu0 0.0
    %417 = vmatprep.subr.mxu0 0.0
    %418 = vmatpush1.msra.mxu0 0.0
    %419 = vmatprep.subr.mxu0 0.0
    %420 = vmatpush1.msra.mxu0 0.0
    %421 = vmatprep.subr.mxu0 0.0
    %422 = vmatpush1.msra.mxu0 0.0
    %423 = vmatprep.subr.mxu0 0.0
    %424 = vmatpush1.msra.mxu0 0.0
    %425 = vmatprep.subr.mxu0 0.0
    %426 = vmatpush1.msra.mxu0 0.0
    %427 = vmatprep.subr.mxu0 0.0
    %428 = vmatpush1.msra.mxu0 0.0
    %429 = vmatprep.subr.mxu0 0.0
    %430 = vmatpush1.msra.mxu0 0.0
    %431 = vmatprep.mubr.f32.mxu0 0.0
    %432 = vmatmul.mubr.f32.gmra.mrb[0].mxu0 %v356
    %v433 = vpop.f32.mrb[0].mxu0
    %v434 = vadd.f32 %v249, %v433
    %v435 = vpop.f32.mrb[0].mxu0
    %436 = vmatprep.mubr.f32.mxu0 0.0
    %437 = vmatmul.mubr.f32.gmra.mrb[0].mxu0 %v359
    %v438 = vpop.f32.mrb[0].mxu0
    %v439 = vadd.f32 %v255, %v438
    %v440 = vpop.f32.mrb[0].mxu0
    %441 = vmatprep.mubr.f32.mxu0 0.0
    %442 = vmatmul.mubr.f32.gmra.mrb[0].mxu0 %v362
    %v443 = vpop.f32.mrb[0].mxu0
    %v444 = vadd.f32 %v261, %v443
    %v445 = vpop.f32.mrb[0].mxu0
    %446 = vmatprep.mubr.f32.mxu0 0.0
    %447 = vmatmul.mubr.f32.gmra.mrb[0].mxu0 %v365
    %v448 = vpop.f32.mrb[0].mxu0
    %v449 = vadd.f32 %v267, %v448
    %v450 = vpop.f32.mrb[0].mxu0
    %451 = vdwg.mxu0
    %v453 = vsel %vm354, %v113, 0
    %v456 = vsel %vm354, %v114, 0
    %v459 = vsel %vm354, %v115, 0
    %v462 = vsel %vm354, %v116, 0
    %464 = vmatprep.subr.mxu0 0.0
    %465 = vmatpush1.msra.mxu0 %v336
    %466 = vmatprep.subr.mxu0 0.0
    %467 = vmatpush1.msra.mxu0 %v341
    %468 = vmatprep.subr.mxu0 0.0
    %469 = vmatpush1.msra.mxu0 %v346
    %470 = vmatprep.subr.mxu0 0.0
    %471 = vmatpush1.msra.mxu0 %v351
    %472 = vmatprep.subr.mxu0 0.0
    %473 = vmatpush1.msra.mxu0 0.0
    %474 = vmatprep.subr.mxu0 0.0
    %475 = vmatpush1.msra.mxu0 0.0
    %476 = vmatprep.subr.mxu0 0.0
    %477 = vmatpush1.msra.mxu0 0.0
    %478 = vmatprep.subr.mxu0 0.0
    %479 = vmatpush1.msra.mxu0 0.0
    %480 = vmatprep.subr.mxu0 0.0
    %481 = vmatpush1.msra.mxu0 0.0
    %482 = vmatprep.subr.mxu0 0.0
    %483 = vmatpush1.msra.mxu0 0.0
    %484 = vmatprep.subr.mxu0 0.0
    %485 = vmatpush1.msra.mxu0 0.0
    %486 = vmatprep.subr.mxu0 0.0
    %487 = vmatpush1.msra.mxu0 0.0
    %488 = vmatprep.subr.mxu0 0.0
    %489 = vmatpush1.msra.mxu0 0.0
    %490 = vmatprep.subr.mxu0 0.0
    %491 = vmatpush1.msra.mxu0 0.0
    %492 = vmatprep.subr.mxu0 0.0
    %493 = vmatpush1.msra.mxu0 0.0
    %494 = vmatprep.subr.mxu0 0.0
    %495 = vmatpush1.msra.mxu0 0.0
    %496 = vmatprep.subr.mxu0 0.0
    %497 = vmatpush1.msra.mxu0 0.0
    %498 = vmatprep.subr.mxu0 0.0
    %499 = vmatpush1.msra.mxu0 0.0
    %500 = vmatprep.subr.mxu0 0.0
    %501 = vmatpush1.msra.mxu0 0.0
    %502 = vmatprep.subr.mxu0 0.0
    %503 = vmatpush1.msra.mxu0 0.0
    %504 = vmatprep.subr.mxu0 0.0
    %505 = vmatpush1.msra.mxu0 0.0
    %506 = vmatprep.subr.mxu0 0.0
    %507 = vmatpush1.msra.mxu0 0.0
    %508 = vmatprep.subr.mxu0 0.0
    %509 = vmatpush1.msra.mxu0 0.0
    %510 = vmatprep.subr.mxu0 0.0
    %511 = vmatpush1.msra.mxu0 0.0
    %512 = vmatprep.subr.mxu0 0.0
    %513 = vmatpush1.msra.mxu0 0.0
    %514 = vmatprep.subr.mxu0 0.0
    %515 = vmatpush1.msra.mxu0 0.0
    %516 = vmatprep.subr.mxu0 0.0
    %517 = vmatpush1.msra.mxu0 0.0
    %518 = vmatprep.subr.mxu0 0.0
    %519 = vmatpush1.msra.mxu0 0.0
    %520 = vmatprep.subr.mxu0 0.0
    %521 = vmatpush1.msra.mxu0 0.0
    %522 = vmatprep.subr.mxu0 0.0
    %523 = vmatpush1.msra.mxu0 0.0
    %524 = vmatprep.subr.mxu0 0.0
    %525 = vmatpush1.msra.mxu0 0.0
    %526 = vmatprep.subr.mxu0 0.0
    %527 = vmatpush1.msra.mxu0 0.0
    %528 = vmatprep.mubr.f32.mxu0 0.0
    %529 = vmatmul.mubr.f32.gmra.mrb[0].mxu0 %v453
    %v530 = vpop.f32.mrb[0].mxu0
    %v531 = vadd.f32 0.0, %v530
    %v532 = vpop.f32.mrb[0].mxu0
    %533 = vmatprep.mubr.f32.mxu0 0.0
    %534 = vmatmul.mubr.f32.gmra.mrb[0].mxu0 %v456
    %v535 = vpop.f32.mrb[0].mxu0
    %v536 = vadd.f32 0.0, %v535
    %v537 = vpop.f32.mrb[0].mxu0
    %538 = vmatprep.mubr.f32.mxu0 0.0
    %539 = vmatmul.mubr.f32.gmra.mrb[0].mxu0 %v459
    %v540 = vpop.f32.mrb[0].mxu0
    %v541 = vadd.f32 0.0, %v540
    %v542 = vpop.f32.mrb[0].mxu0
    %543 = vmatprep.mubr.f32.mxu0 0.0
    %544 = vmatmul.mubr.f32.gmra.mrb[0].mxu0 %v462
    %v545 = vpop.f32.mrb[0].mxu0
    %v546 = vadd.f32 0.0, %v545
    %v547 = vpop.f32.mrb[0].mxu0
    %548 = vdwg.mxu0
    %v549 = vadd.f32 %v434, %v531
    %v550 = vadd.f32 %v439, %v536
    %v551 = vadd.f32 %v444, %v541
    %v552 = vadd.f32 %v449, %v546
    %v553 = vld [vmem:[%s5] sm:$0x1]
    %v555 = vlaneseq
    %v556 = vshrl.u32 %v555, 7
    %v557 = vsub.s32 0, %v556
    %v558 = vrot.slane %v553, %v557
    %v560 = vmul.f32 %v549, %v558
    %v561 = vmul.f32 %v550, %v558
    %v562 = vmul.f32 %v551, %v558
    %v563 = vmul.f32 %v552, %v558
    %v564 = vld [vmem:[%s6] sm:$0x1]
    %v566 = vlaneseq
    %v567 = vshrl.u32 %v566, 7
    %v568 = vsub.s32 0, %v567
    %v569 = vrot.slane %v564, %v568
    %v571 = vadd.f32 %v560, %v569
    %v572 = vadd.f32 %v561, %v569
    %v573 = vadd.f32 %v562, %v569
    %v574 = vadd.f32 %v563, %v569
    %v575 = vmax.f32 %v571, 0.0
    %v576 = vmax.f32 %v572, 0.0
    %v577 = vmax.f32 %v573, 0.0
    %v578 = vmax.f32 %v574, 0.0
    %v579 = vld [vmem:[#allocation8] sm:$0xff]
    %v580 = vld [vmem:[#allocation8 + $0x8] sm:$0xff]
    %v581 = vld [vmem:[#allocation8 + $0x10] sm:$0xff]
    %v582 = vld [vmem:[#allocation8 + $0x18] sm:$0xff]
    %v583 = vld [vmem:[#allocation8 + $0x20] sm:$0xff]
    %v584 = vld [vmem:[#allocation8 + $0x28] sm:$0xff]
    %v585 = vld [vmem:[#allocation8 + $0x30] sm:$0xff]
    %v586 = vld [vmem:[#allocation8 + $0x38] sm:$0xff]
    %v587 = vld [vmem:[#allocation8 + $0x40] sm:$0xff]
    %v588 = vld [vmem:[#allocation8 + $0x48] sm:$0xff]
    %v589 = vld [vmem:[#allocation8 + $0x50] sm:$0xff]
    %v590 = vld [vmem:[#allocation8 + $0x58] sm:$0xff]
    %v591 = vld [vmem:[#allocation8 + $0x60] sm:$0xff]
    %v592 = vld [vmem:[#allocation8 + $0x68] sm:$0xff]
    %v593 = vld [vmem:[#allocation8 + $0x70] sm:$0xff]
    %v594 = vld [vmem:[#allocation8 + $0x78] sm:$0xff]
    %v595 = vld [vmem:[#allocation8 + $0x80] sm:$0xff]
    %v596 = vld [vmem:[#allocation8 + $0x88] sm:$0xff]
    %v597 = vld [vmem:[#allocation8 + $0x90] sm:$0xff]
    %v598 = vld [vmem:[#allocation8 + $0x98] sm:$0xff]
    %v599 = vld [vmem:[#allocation8 + $0xa0] sm:$0xff]
    %v600 = vld [vmem:[#allocation8 + $0xa8] sm:$0xff]
    %v601 = vld [vmem:[#allocation8 + $0xb0] sm:$0xff]
    %v602 = vld [vmem:[#allocation8 + $0xb8] sm:$0xff]
    %v603 = vld [vmem:[#allocation8 + $0xc0] sm:$0xff]
    %v604 = vld [vmem:[#allocation8 + $0xc8] sm:$0xff]
    %v605 = vld [vmem:[#allocation8 + $0xd0] sm:$0xff]
    %v606 = vld [vmem:[#allocation8 + $0xd8] sm:$0xff]
    %v607 = vld [vmem:[#allocation8 + $0xe0] sm:$0xff]
    %v608 = vld [vmem:[#allocation8 + $0xe8] sm:$0xff]
    %v609 = vld [vmem:[#allocation8 + $0xf0] sm:$0xff]
    %v610 = vld [vmem:[#allocation8 + $0xf8] sm:$0xff]
    %v611 = vld [vmem:[#allocation8 + $0x100] sm:$0xff]
    %v612 = vld [vmem:[#allocation8 + $0x108] sm:$0xff]
    %v613 = vld [vmem:[#allocation8 + $0x110] sm:$0xff]
    %v614 = vld [vmem:[#allocation8 + $0x118] sm:$0xff]
    %v615 = vld [vmem:[#allocation8 + $0x120] sm:$0xff]
    %v616 = vld [vmem:[#allocation8 + $0x128] sm:$0xff]
    %v617 = vld [vmem:[#allocation8 + $0x130] sm:$0xff]
    %v618 = vld [vmem:[#allocation8 + $0x138] sm:$0xff]
    %v619 = vld [vmem:[#allocation8 + $0x140] sm:$0xff]
    %v620 = vld [vmem:[#allocation8 + $0x148] sm:$0xff]
    %v621 = vld [vmem:[#allocation8 + $0x150] sm:$0xff]
    %v622 = vld [vmem:[#allocation8 + $0x158] sm:$0xff]
    %v623 = vld [vmem:[#allocation8 + $0x160] sm:$0xff]
    %v624 = vld [vmem:[#allocation8 + $0x168] sm:$0xff]
    %v625 = vld [vmem:[#allocation8 + $0x170] sm:$0xff]
    %v626 = vld [vmem:[#allocation8 + $0x178] sm:$0xff]
    %627 = vmatprep.subr.mxu0 %v580
    %628 = vmatpush1.msra.mxu0 %v579
    %629 = vmatprep.subr.mxu0 %v583
    %630 = vmatpush1.msra.mxu0 %v582
    %631 = vmatprep.subr.mxu0 %v586
    %632 = vmatpush1.msra.mxu0 %v585
    %633 = vmatprep.subr.mxu0 %v589
    %634 = vmatpush1.msra.mxu0 %v588
    %635 = vmatprep.subr.mxu0 %v592
    %636 = vmatpush1.msra.mxu0 %v591
    %637 = vmatprep.subr.mxu0 %v595
    %638 = vmatpush1.msra.mxu0 %v594
    %639 = vmatprep.subr.mxu0 %v598
    %640 = vmatpush1.msra.mxu0 %v597
    %641 = vmatprep.subr.mxu0 %v601
    %642 = vmatpush1.msra.mxu0 %v600
    %643 = vmatprep.subr.mxu0 %v604
    %644 = vmatpush1.msra.mxu0 %v603
    %645 = vmatprep.subr.mxu0 %v607
    %646 = vmatpush1.msra.mxu0 %v606
    %647 = vmatprep.subr.mxu0 %v610
    %648 = vmatpush1.msra.mxu0 %v609
    %649 = vmatprep.subr.mxu0 %v613
    %650 = vmatpush1.msra.mxu0 %v612
    %651 = vmatprep.subr.mxu0 %v616
    %652 = vmatpush1.msra.mxu0 %v615
    %653 = vmatprep.subr.mxu0 %v619
    %654 = vmatpush1.msra.mxu0 %v618
    %655 = vmatprep.subr.mxu0 %v622
    %656 = vmatpush1.msra.mxu0 %v621
    %657 = vmatprep.subr.mxu0 %v625
    %658 = vmatpush1.msra.mxu0 %v624
    %659 = vmatprep.subr.mxu0 0.0
    %660 = vmatpush1.msra.mxu0 0.0
    %661 = vmatprep.subr.mxu0 0.0
    %662 = vmatpush1.msra.mxu0 0.0
    %663 = vmatprep.subr.mxu0 0.0
    %664 = vmatpush1.msra.mxu0 0.0
    %665 = vmatprep.subr.mxu0 0.0
    %666 = vmatpush1.msra.mxu0 0.0
    %667 = vmatprep.subr.mxu0 0.0
    %668 = vmatpush1.msra.mxu0 0.0
    %669 = vmatprep.subr.mxu0 0.0
    %670 = vmatpush1.msra.mxu0 0.0
    %671 = vmatprep.subr.mxu0 0.0
    %672 = vmatpush1.msra.mxu0 0.0
    %673 = vmatprep.subr.mxu0 0.0
    %674 = vmatpush1.msra.mxu0 0.0
    %675 = vmatprep.subr.mxu0 0.0
    %676 = vmatpush1.msra.mxu0 0.0
    %677 = vmatprep.subr.mxu0 0.0
    %678 = vmatpush1.msra.mxu0 0.0
    %679 = vmatprep.subr.mxu0 0.0
    %680 = vmatpush1.msra.mxu0 0.0
    %681 = vmatprep.subr.mxu0 0.0
    %682 = vmatpush1.msra.mxu0 0.0
    %683 = vmatprep.subr.mxu0 0.0
    %684 = vmatpush1.msra.mxu0 0.0
    %685 = vmatprep.subr.mxu0 0.0
    %686 = vmatpush1.msra.mxu0 0.0
    %687 = vmatprep.subr.mxu0 0.0
    %688 = vmatpush1.msra.mxu0 0.0
    %689 = vmatprep.subr.mxu0 0.0
    %690 = vmatpush1.msra.mxu0 0.0
    %691 = vmatprep.mubr.f32.mxu0 0.0
    %692 = vmatmul.mubr.f32.gmra.mrb[0].mxu0 %v575
    %v693 = vpop.f32.mrb[0].mxu0
    %v694 = vadd.f32 0.0, %v693
    %v695 = vpop.f32.mrb[0].mxu0
    %v696 = vadd.f32 0.0, %v695
    %697 = vmatprep.mubr.f32.mxu0 0.0
    %698 = vmatmul.mubr.f32.gmra.mrb[0].mxu0 %v576
    %v699 = vpop.f32.mrb[0].mxu0
    %v700 = vadd.f32 0.0, %v699
    %v701 = vpop.f32.mrb[0].mxu0
    %v702 = vadd.f32 0.0, %v701
    %703 = vmatprep.mubr.f32.mxu0 0.0
    %704 = vmatmul.mubr.f32.gmra.mrb[0].mxu0 %v577
    %v705 = vpop.f32.mrb[0].mxu0
    %v706 = vadd.f32 0.0, %v705
    %v707 = vpop.f32.mrb[0].mxu0
    %v708 = vadd.f32 0.0, %v707
    %709 = vmatprep.mubr.f32.mxu0 0.0
    %710 = vmatmul.mubr.f32.gmra.mrb[0].mxu0 %v578
    %v711 = vpop.f32.mrb[0].mxu0
    %v712 = vadd.f32 0.0, %v711
    %v713 = vpop.f32.mrb[0].mxu0
    %v714 = vadd.f32 0.0, %v713
    %715 = vdwg.mxu0
    %716 = vmatprep.subr.mxu0 0.0
    %717 = vmatpush1.msra.mxu0 %v581
    %718 = vmatprep.subr.mxu0 0.0
    %719 = vmatpush1.msra.mxu0 %v584
    %720 = vmatprep.subr.mxu0 0.0
    %721 = vmatpush1.msra.mxu0 %v587
    %722 = vmatprep.subr.mxu0 0.0
    %723 = vmatpush1.msra.mxu0 %v590
    %724 = vmatprep.subr.mxu0 0.0
    %725 = vmatpush1.msra.mxu0 %v593
    %726 = vmatprep.subr.mxu0 0.0
    %727 = vmatpush1.msra.mxu0 %v596
    %728 = vmatprep.subr.mxu0 0.0
    %729 = vmatpush1.msra.mxu0 %v599
    %730 = vmatprep.subr.mxu0 0.0
    %731 = vmatpush1.msra.mxu0 %v602
    %732 = vmatprep.subr.mxu0 0.0
    %733 = vmatpush1.msra.mxu0 %v605
    %734 = vmatprep.subr.mxu0 0.0
    %735 = vmatpush1.msra.mxu0 %v608
    %736 = vmatprep.subr.mxu0 0.0
    %737 = vmatpush1.msra.mxu0 %v611
    %738 = vmatprep.subr.mxu0 0.0
    %739 = vmatpush1.msra.mxu0 %v614
    %740 = vmatprep.subr.mxu0 0.0
    %741 = vmatpush1.msra.mxu0 %v617
    %742 = vmatprep.subr.mxu0 0.0
    %743 = vmatpush1.msra.mxu0 %v620
    %744 = vmatprep.subr.mxu0 0.0
    %745 = vmatpush1.msra.mxu0 %v623
    %746 = vmatprep.subr.mxu0 0.0
    %747 = vmatpush1.msra.mxu0 %v626
    %748 = vmatprep.subr.mxu0 0.0
    %749 = vmatpush1.msra.mxu0 0.0
    %750 = vmatprep.subr.mxu0 0.0
    %751 = vmatpush1.msra.mxu0 0.0
    %752 = vmatprep.subr.mxu0 0.0
    %753 = vmatpush1.msra.mxu0 0.0
    %754 = vmatprep.subr.mxu0 0.0
    %755 = vmatpush1.msra.mxu0 0.0
    %756 = vmatprep.subr.mxu0 0.0
    %757 = vmatpush1.msra.mxu0 0.0
    %758 = vmatprep.subr.mxu0 0.0
    %759 = vmatpush1.msra.mxu0 0.0
    %760 = vmatprep.subr.mxu0 0.0
    %761 = vmatpush1.msra.mxu0 0.0
    %762 = vmatprep.subr.mxu0 0.0
    %763 = vmatpush1.msra.mxu0 0.0
    %764 = vmatprep.subr.mxu0 0.0
    %765 = vmatpush1.msra.mxu0 0.0
    %766 = vmatprep.subr.mxu0 0.0
    %767 = vmatpush1.msra.mxu0 0.0
    %768 = vmatprep.subr.mxu0 0.0
    %769 = vmatpush1.msra.mxu0 0.0
    %770 = vmatprep.subr.mxu0 0.0
    %771 = vmatpush1.msra.mxu0 0.0
    %772 = vmatprep.subr.mxu0 0.0
    %773 = vmatpush1.msra.mxu0 0.0
    %774 = vmatprep.subr.mxu0 0.0
    %775 = vmatpush1.msra.mxu0 0.0
    %776 = vmatprep.subr.mxu0 0.0
    %777 = vmatpush1.msra.mxu0 0.0
    %778 = vmatprep.subr.mxu0 0.0
    %779 = vmatpush1.msra.mxu0 0.0
    %780 = vmatprep.mubr.f32.mxu0 0.0
    %781 = vmatmul.mubr.f32.gmra.mrb[0].mxu0 %v575
    %v782 = vpop.f32.mrb[0].mxu0
    %v783 = vadd.f32 0.0, %v782
    %v784 = vpop.f32.mrb[0].mxu0
    %785 = vmatprep.mubr.f32.mxu0 0.0
    %786 = vmatmul.mubr.f32.gmra.mrb[0].mxu0 %v576
    %v787 = vpop.f32.mrb[0].mxu0
    %v788 = vadd.f32 0.0, %v787
    %v789 = vpop.f32.mrb[0].mxu0
    %790 = vmatprep.mubr.f32.mxu0 0.0
    %791 = vmatmul.mubr.f32.gmra.mrb[0].mxu0 %v577
    %v792 = vpop.f32.mrb[0].mxu0
    %v793 = vadd.f32 0.0, %v792
    %v794 = vpop.f32.mrb[0].mxu0
    %795 = vmatprep.mubr.f32.mxu0 0.0
    %796 = vmatmul.mubr.f32.gmra.mrb[0].mxu0 %v578
    %v797 = vpop.f32.mrb[0].mxu0
    %v798 = vadd.f32 0.0, %v797
    %v799 = vpop.f32.mrb[0].mxu0
    %800 = vdwg.mxu0
    %801 = vmatprep.subr.mxu0 0.0
    %802 = vmatpush1.msra.mxu0 %v694
    %803 = vmatprep.subr.mxu0 0.0
    %804 = vmatpush1.msra.mxu0 %v700
    %805 = vmatprep.subr.mxu0 0.0
    %806 = vmatpush1.msra.mxu0 %v706
    %807 = vmatprep.subr.mxu0 0.0
    %808 = vmatpush1.msra.mxu0 %v712
    %809 = vmatprep.subr.mxu0 0.0
    %810 = vmatpush1.msra.mxu0 0.0
    %811 = vmatprep.subr.mxu0 0.0
    %812 = vmatpush1.msra.mxu0 0.0
    %813 = vmatprep.subr.mxu0 0.0
    %814 = vmatpush1.msra.mxu0 0.0
    %815 = vmatprep.subr.mxu0 0.0
    %816 = vmatpush1.msra.mxu0 0.0
    %817 = vmatprep.subr.mxu0 0.0
    %818 = vmatpush1.msra.mxu0 0.0
    %819 = vmatprep.subr.mxu0 0.0
    %820 = vmatpush1.msra.mxu0 0.0
    %821 = vmatprep.subr.mxu0 0.0
    %822 = vmatpush1.msra.mxu0 0.0
    %823 = vmatprep.subr.mxu0 0.0
    %824 = vmatpush1.msra.mxu0 0.0
    %825 = vmatprep.subr.mxu0 0.0
    %826 = vmatpush1.msra.mxu0 0.0
    %827 = vmatprep.subr.mxu0 0.0
    %828 = vmatpush1.msra.mxu0 0.0
    %829 = vmatprep.subr.mxu0 0.0
    %830 = vmatpush1.msra.mxu0 0.0
    %831 = vmatprep.subr.mxu0 0.0
    %832 = vmatpush1.msra.mxu0 0.0
    %833 = vmatprep.subr.mxu0 0.0
    %834 = vmatpush1.msra.mxu0 0.0
    %835 = vmatprep.subr.mxu0 0.0
    %836 = vmatpush1.msra.mxu0 0.0
    %837 = vmatprep.subr.mxu0 0.0
    %838 = vmatpush1.msra.mxu0 0.0
    %839 = vmatprep.subr.mxu0 0.0
    %840 = vmatpush1.msra.mxu0 0.0
    %841 = vmatprep.subr.mxu0 0.0
    %842 = vmatpush1.msra.mxu0 0.0
    %843 = vmatprep.subr.mxu0 0.0
    %844 = vmatpush1.msra.mxu0 0.0
    %845 = vmatprep.subr.mxu0 0.0
    %846 = vmatpush1.msra.mxu0 0.0
    %847 = vmatprep.subr.mxu0 0.0
    %848 = vmatpush1.msra.mxu0 0.0
    %849 = vmatprep.subr.mxu0 0.0
    %850 = vmatpush1.msra.mxu0 0.0
    %851 = vmatprep.subr.mxu0 0.0
    %852 = vmatpush1.msra.mxu0 0.0
    %853 = vmatprep.subr.mxu0 0.0
    %854 = vmatpush1.msra.mxu0 0.0
    %855 = vmatprep.subr.mxu0 0.0
    %856 = vmatpush1.msra.mxu0 0.0
    %857 = vmatprep.subr.mxu0 0.0
    %858 = vmatpush1.msra.mxu0 0.0
    %859 = vmatprep.subr.mxu0 0.0
    %860 = vmatpush1.msra.mxu0 0.0
    %861 = vmatprep.subr.mxu0 0.0
    %862 = vmatpush1.msra.mxu0 0.0
    %863 = vmatprep.subr.mxu0 0.0
    %864 = vmatpush1.msra.mxu0 0.0
    %865 = vmatprep.mubr.f32.mxu0 0.0
    %866 = vmatmul.mubr.f32.gmra.mrb[0].mxu0 %v356
    %v867 = vpop.f32.mrb[0].mxu0
    %v868 = vadd.f32 %v696, %v867
    %v869 = vpop.f32.mrb[0].mxu0
    %870 = vmatprep.mubr.f32.mxu0 0.0
    %871 = vmatmul.mubr.f32.gmra.mrb[0].mxu0 %v359
    %v872 = vpop.f32.mrb[0].mxu0
    %v873 = vadd.f32 %v702, %v872
    %v874 = vpop.f32.mrb[0].mxu0
    %875 = vmatprep.mubr.f32.mxu0 0.0
    %876 = vmatmul.mubr.f32.gmra.mrb[0].mxu0 %v362
    %v877 = vpop.f32.mrb[0].mxu0
    %v878 = vadd.f32 %v708, %v877
    %v879 = vpop.f32.mrb[0].mxu0
    %880 = vmatprep.mubr.f32.mxu0 0.0
    %881 = vmatmul.mubr.f32.gmra.mrb[0].mxu0 %v365
    %v882 = vpop.f32.mrb[0].mxu0
    %v883 = vadd.f32 %v714, %v882
    %v884 = vpop.f32.mrb[0].mxu0
    %885 = vdwg.mxu0
    %886 = vmatprep.subr.mxu0 0.0
    %887 = vmatpush1.msra.mxu0 %v783
    %888 = vmatprep.subr.mxu0 0.0
    %889 = vmatpush1.msra.mxu0 %v788
    %890 = vmatprep.subr.mxu0 0.0
    %891 = vmatpush1.msra.mxu0 %v793
    %892 = vmatprep.subr.mxu0 0.0
    %893 = vmatpush1.msra.mxu0 %v798
    %894 = vmatprep.subr.mxu0 0.0
    %895 = vmatpush1.msra.mxu0 0.0
    %896 = vmatprep.subr.mxu0 0.0
    %897 = vmatpush1.msra.mxu0 0.0
    %898 = vmatprep.subr.mxu0 0.0
    %899 = vmatpush1.msra.mxu0 0.0
    %900 = vmatprep.subr.mxu0 0.0
    %901 = vmatpush1.msra.mxu0 0.0
    %902 = vmatprep.subr.mxu0 0.0
    %903 = vmatpush1.msra.mxu0 0.0
    %904 = vmatprep.subr.mxu0 0.0
    %905 = vmatpush1.msra.mxu0 0.0
    %906 = vmatprep.subr.mxu0 0.0
    %907 = vmatpush1.msra.mxu0 0.0
    %908 = vmatprep.subr.mxu0 0.0
    %909 = vmatpush1.msra.mxu0 0.0
    %910 = vmatprep.subr.mxu0 0.0
    %911 = vmatpush1.msra.mxu0 0.0
    %912 = vmatprep.subr.mxu0 0.0
    %913 = vmatpush1.msra.mxu0 0.0
    %914 = vmatprep.subr.mxu0 0.0
    %915 = vmatpush1.msra.mxu0 0.0
    %916 = vmatprep.subr.mxu0 0.0
    %917 = vmatpush1.msra.mxu0 0.0
    %918 = vmatprep.subr.mxu0 0.0
    %919 = vmatpush1.msra.mxu0 0.0
    %920 = vmatprep.subr.mxu0 0.0
    %921 = vmatpush1.msra.mxu0 0.0
    %922 = vmatprep.subr.mxu0 0.0
    %923 = vmatpush1.msra.mxu0 0.0
    %924 = vmatprep.subr.mxu0 0.0
    %925 = vmatpush1.msra.mxu0 0.0
    %926 = vmatprep.subr.mxu0 0.0
    %927 = vmatpush1.msra.mxu0 0.0
    %928 = vmatprep.subr.mxu0 0.0
    %929 = vmatpush1.msra.mxu0 0.0
    %930 = vmatprep.subr.mxu0 0.0
    %931 = vmatpush1.msra.mxu0 0.0
    %932 = vmatprep.subr.mxu0 0.0
    %933 = vmatpush1.msra.mxu0 0.0
    %934 = vmatprep.subr.mxu0 0.0
    %935 = vmatpush1.msra.mxu0 0.0
    %936 = vmatprep.subr.mxu0 0.0
    %937 = vmatpush1.msra.mxu0 0.0
    %938 = vmatprep.subr.mxu0 0.0
    %939 = vmatpush1.msra.mxu0 0.0
    %940 = vmatprep.subr.mxu0 0.0
    %941 = vmatpush1.msra.mxu0 0.0
    %942 = vmatprep.subr.mxu0 0.0
    %943 = vmatpush1.msra.mxu0 0.0
    %944 = vmatprep.subr.mxu0 0.0
    %945 = vmatpush1.msra.mxu0 0.0
    %946 = vmatprep.subr.mxu0 0.0
    %947 = vmatpush1.msra.mxu0 0.0
    %948 = vmatprep.subr.mxu0 0.0
    %949 = vmatpush1.msra.mxu0 0.0
    %950 = vmatprep.mubr.f32.mxu0 0.0
    %951 = vmatmul.mubr.f32.gmra.mrb[0].mxu0 %v453
    %v952 = vpop.f32.mrb[0].mxu0
    %v953 = vadd.f32 0.0, %v952
    %v954 = vpop.f32.mrb[0].mxu0
    %955 = vmatprep.mubr.f32.mxu0 0.0
    %956 = vmatmul.mubr.f32.gmra.mrb[0].mxu0 %v456
    %v957 = vpop.f32.mrb[0].mxu0
    %v958 = vadd.f32 0.0, %v957
    %v959 = vpop.f32.mrb[0].mxu0
    %960 = vmatprep.mubr.f32.mxu0 0.0
    %961 = vmatmul.mubr.f32.gmra.mrb[0].mxu0 %v459
    %v962 = vpop.f32.mrb[0].mxu0
    %v963 = vadd.f32 0.0, %v962
    %v964 = vpop.f32.mrb[0].mxu0
    %965 = vmatprep.mubr.f32.mxu0 0.0
    %966 = vmatmul.mubr.f32.gmra.mrb[0].mxu0 %v462
    %v967 = vpop.f32.mrb[0].mxu0
    %v968 = vadd.f32 0.0, %v967
    %v969 = vpop.f32.mrb[0].mxu0
    %970 = vdwg.mxu0
    %v971 = vadd.f32 %v868, %v953
    %v972 = vadd.f32 %v873, %v958
    %v973 = vadd.f32 %v878, %v963
    %v974 = vadd.f32 %v883, %v968
    %v975 = vld [vmem:[#allocation10] sm:$0xff]
    %v976 = vld [vmem:[#allocation10 + $0x8] sm:$0xff]
    %v977 = vld [vmem:[#allocation10 + $0x10] sm:$0xff]
    %v978 = vld [vmem:[#allocation10 + $0x18] sm:$0xff]
    %v979 = vld [vmem:[#allocation10 + $0x20] sm:$0xff]
    %v980 = vld [vmem:[#allocation10 + $0x28] sm:$0xff]
    %v981 = vld [vmem:[#allocation10 + $0x30] sm:$0xff]
    %v982 = vld [vmem:[#allocation10 + $0x38] sm:$0xff]
    %v984 = vsel %vm167, %v104, 0
    %v987 = vsel %vm167, %v105, 0
    %v990 = vsel %vm167, %v106, 0
    %v993 = vsel %vm167, %v107, 0
    %995 = vmatprep.subr.mxu0 0.0
    %996 = vmatpush1.msra.mxu0 %v975
    %997 = vmatprep.subr.mxu0 0.0
    %998 = vmatpush1.msra.mxu0 %v976
    %999 = vmatprep.subr.mxu0 0.0
    %1000 = vmatpush1.msra.mxu0 %v977
    %1001 = vmatprep.subr.mxu0 0.0
    %1002 = vmatpush1.msra.mxu0 %v978
    %1003 = vmatprep.subr.mxu0 0.0
    %1004 = vmatpush1.msra.mxu0 %v979
    %1005 = vmatprep.subr.mxu0 0.0
    %1006 = vmatpush1.msra.mxu0 %v980
    %1007 = vmatprep.subr.mxu0 0.0
    %1008 = vmatpush1.msra.mxu0 %v981
    %1009 = vmatprep.subr.mxu0 0.0
    %1010 = vmatpush1.msra.mxu0 %v982
    %1011 = vmatprep.subr.mxu0 0.0
    %1012 = vmatpush1.msra.mxu0 0.0
    %1013 = vmatprep.subr.mxu0 0.0
    %1014 = vmatpush1.msra.mxu0 0.0
    %1015 = vmatprep.subr.mxu0 0.0
    %1016 = vmatpush1.msra.mxu0 0.0
    %1017 = vmatprep.subr.mxu0 0.0
    %1018 = vmatpush1.msra.mxu0 0.0
    %1019 = vmatprep.subr.mxu0 0.0
    %1020 = vmatpush1.msra.mxu0 0.0
    %1021 = vmatprep.subr.mxu0 0.0
    %1022 = vmatpush1.msra.mxu0 0.0
    %1023 = vmatprep.subr.mxu0 0.0
    %1024 = vmatpush1.msra.mxu0 0.0
    %1025 = vmatprep.subr.mxu0 0.0
    %1026 = vmatpush1.msra.mxu0 0.0
    %1027 = vmatprep.subr.mxu0 0.0
    %1028 = vmatpush1.msra.mxu0 0.0
    %1029 = vmatprep.subr.mxu0 0.0
    %1030 = vmatpush1.msra.mxu0 0.0
    %1031 = vmatprep.subr.mxu0 0.0
    %1032 = vmatpush1.msra.mxu0 0.0
    %1033 = vmatprep.subr.mxu0 0.0
    %1034 = vmatpush1.msra.mxu0 0.0
    %1035 = vmatprep.subr.mxu0 0.0
    %1036 = vmatpush1.msra.mxu0 0.0
    %1037 = vmatprep.subr.mxu0 0.0
    %1038 = vmatpush1.msra.mxu0 0.0
    %1039 = vmatprep.subr.mxu0 0.0
    %1040 = vmatpush1.msra.mxu0 0.0
    %1041 = vmatprep.subr.mxu0 0.0
    %1042 = vmatpush1.msra.mxu0 0.0
    %1043 = vmatprep.subr.mxu0 0.0
    %1044 = vmatpush1.msra.mxu0 0.0
    %1045 = vmatprep.subr.mxu0 0.0
    %1046 = vmatpush1.msra.mxu0 0.0
    %1047 = vmatprep.subr.mxu0 0.0
    %1048 = vmatpush1.msra.mxu0 0.0
    %1049 = vmatprep.subr.mxu0 0.0
    %1050 = vmatpush1.msra.mxu0 0.0
    %1051 = vmatprep.subr.mxu0 0.0
    %1052 = vmatpush1.msra.mxu0 0.0
    %1053 = vmatprep.subr.mxu0 0.0
    %1054 = vmatpush1.msra.mxu0 0.0
    %1055 = vmatprep.subr.mxu0 0.0
    %1056 = vmatpush1.msra.mxu0 0.0
    %1057 = vmatprep.subr.mxu0 0.0
    %1058 = vmatpush1.msra.mxu0 0.0
    %1059 = vmatprep.mubr.f32.mxu0 0.0
    %1060 = vmatmul.mubr.f32.gmra.mrb[0].mxu0 %v984
    %v1061 = vpop.f32.mrb[0].mxu0
    %v1062 = vadd.f32 0.0, %v1061
    %v1063 = vpop.f32.mrb[0].mxu0
    %1064 = vmatprep.mubr.f32.mxu0 0.0
    %1065 = vmatmul.mubr.f32.gmra.mrb[0].mxu0 %v987
    %v1066 = vpop.f32.mrb[0].mxu0
    %v1067 = vadd.f32 0.0, %v1066
    %v1068 = vpop.f32.mrb[0].mxu0
    %1069 = vmatprep.mubr.f32.mxu0 0.0
    %1070 = vmatmul.mubr.f32.gmra.mrb[0].mxu0 %v990
    %v1071 = vpop.f32.mrb[0].mxu0
    %v1072 = vadd.f32 0.0, %v1071
    %v1073 = vpop.f32.mrb[0].mxu0
    %1074 = vmatprep.mubr.f32.mxu0 0.0
    %1075 = vmatmul.mubr.f32.gmra.mrb[0].mxu0 %v993
    %v1076 = vpop.f32.mrb[0].mxu0
    %v1077 = vadd.f32 0.0, %v1076
    %v1078 = vpop.f32.mrb[0].mxu0
    %1079 = vdwg.mxu0
    %v1080 = vadd.f32 %v971, %v1062
    %v1081 = vadd.f32 %v972, %v1067
    %v1082 = vadd.f32 %v973, %v1072
    %v1083 = vadd.f32 %v974, %v1077
    %v1084 = vld [vmem:[%s9] sm:$0x1]
    %v1086 = vlaneseq
    %v1087 = vshrl.u32 %v1086, 7
    %v1088 = vsub.s32 0, %v1087
    %v1089 = vrot.slane %v1084, %v1088
    %v1091 = vadd.f32 %v1080, %v1089
    %v1092 = vadd.f32 %v1081, %v1089
    %v1093 = vadd.f32 %v1082, %v1089
    %v1094 = vadd.f32 %v1083, %v1089
    %1095 = vst [vmem:[#allocation11] sm:$0xff] %v1091
    %1096 = vst [vmem:[#allocation11 + $0x8] sm:$0xff] %v1092
    %1097 = vst [vmem:[#allocation11 + $0x10] sm:$0xff] %v1093
    %1098 = vst [vmem:[#allocation11 + $0x18] sm:$0xff] %v1094
    // Predicated region
    $region62: #{tpu_custom_call.1} parent=1 // pred_check
      _
    $region63: #{tpu_custom_call.1} parent=1 // pred_check_branch
      %1100 = sbr.rel (0) target = $region65
    $region64: #{tpu_custom_call.1} parent=1 // pred_region
      %s1102 = ssub.s32 512, 512
      %1103 = vsyncadd [#allocation4], %s1102
      %s1104 = sshll.u32 [#allocation11], 4
      %s1105 = int_to_ptr.vmem [resolvable:$true] %s1104
      %1110 = dma.vmem_to_hbm [thread:$0]  %s1105, 512, %s10, [#allocation4], 128, 128, 8
    $region65: #{tpu_custom_call.1} parent=1 // pred_fallthru
      _
    // Predicated region
    $region66: #{tpu_custom_call.1} parent=1 // pred_check
      _
    $region67: #{tpu_custom_call.1} parent=1 // pred_check_branch
      %1112 = sbr.rel (0) target = $region69
    $region68: #{tpu_custom_call.1} parent=1 // pred_region
      %1113 = dma.done [#allocation4], 512
    $region69: #{tpu_custom_call.1} parent=1 // pred_fallthru
      _
    %1114 = vsyncpa [#allocation3], 1
    %1115 = vsyncpa [#allocation6], 1
    %1116 = vsyncpa [#allocation9], 1
    %1117 = vsyncpa [#allocation4], 1

</llo_original>
